<compile_context>
chip_gen: v7x
topology: tpu7x:2x2x1
jax: 0.10.0
libtpu: 0.0.40
codegen_flags: <defaults>
</compile_context>

<pallas_src>
import math
import random as pyrandom
from functools import partial

import jax
import jax.numpy as jnp
from jax import lax
from jax.experimental import pallas as pl
from jax.experimental.pallas import tpu as pltpu

EPS = 1e-8


def _round_up(x, m):
    return (x + m - 1) // m * m


def _pick_tile(padded_dim, cap):
    """Largest multiple of 128 that divides padded_dim and is <= cap."""
    best = 128
    t = 128
    while t <= min(cap, padded_dim):
        if padded_dim % t == 0:
            best = t
        t += 128
    return best


def _choose_tiling(O_pad, CKK_pad, HW_pad, w_itemsize, x_itemsize, out_itemsize,
                   *, max_hw_tile, max_ckk_tile, vmem_budget, weight_resident):
    """Pick (tCKK, tHW, resident) so the double-buffered footprint fits VMEM."""

    def footprint(tckk, thw, resident):
        w_cols = CKK_pad if resident else tckk
        return (2 * O_pad * w_cols * w_itemsize       # weight (2 buffers)
                + 2 * tckk * 4                        # ymod tile
                + 2 * O_pad * 4                       # demod factors
                + 2 * tckk * thw * x_itemsize         # im2col patch tile
                + 2 * O_pad * thw * out_itemsize      # output tile
                + O_pad * thw * 4)                    # f32 accumulator scratch

    tCKK = _pick_tile(CKK_pad, max_ckk_tile)
    tHW = _pick_tile(HW_pad, max_hw_tile)

    auto = weight_resident is None
    resident = (footprint(tCKK, tHW, True) <= vmem_budget) if auto \
        else weight_resident

    while footprint(tCKK, tHW, resident) > vmem_budget:
        if tCKK > 256:
            tCKK = _pick_tile(CKK_pad, tCKK - 128)   # cheapest: more red. steps
        elif tHW > 256:
            tHW = _pick_tile(HW_pad, tHW - 128)      # costs extra weight re-reads
        elif tCKK > 128:
            tCKK = 128
        elif tHW > 128:
            tHW = 128
        elif resident and auto:
            resident = False                         # stop holding full weight
        else:
            break
    return tCKK, tHW, resident


def _conv2d_mod_kernel(w_ref, ymod_ref, d_ref, patch_ref, out_ref, acc_ref,
                       *, w_resident, tCKK):
    # w_ref:     (O_pad, CKK_pad) if w_resident else (O_pad, tCKK)  [compute dt]
    # ymod_ref:  (1, 1, tCKK)      this sample's (y + 1), repeated over K*K
    # d_ref:     (1, O_pad, 1)     precomputed demod factor (f32)
    # patch_ref: (1, tCKK, tHW)    im2col patch tile (compute dtype)
    # out_ref:   (1, O_pad, tHW)
    # acc_ref:   (O_pad, tHW) f32  resident across the CKK reduction axis
    kk = pl.program_id(2)

    @pl.when(kk == 0)
    def _init():
        acc_ref[...] = jnp.zeros_like(acc_ref)

    if w_resident:
        # Full weight lives in VMEM for the whole grid (constant block index
        # => DMA'd once); slice the current 128-aligned reduction chunk.
        start = pl.multiple_of(kk * tCKK, 128)
        w = w_ref[:, pl.ds(start, tCKK)]
    else:
        w = w_ref[...]

    # Per-tile modulation in f32 on the VPU; cast only the MXU operands.
    wmod = w.astype(jnp.float32) * ymod_ref[0]                   # (O_pad, tCKK)
    acc_ref[...] += jnp.dot(wmod.astype(patch_ref.dtype), patch_ref[0],
                            preferred_element_type=jnp.float32)  # (O_pad, tHW)

    @pl.when(kk == pl.num_programs(2) - 1)
    def _finalize():
        out_ref[0] = (acc_ref[...] * d_ref[0]).astype(out_ref.dtype)


def conv2d_mod(x, y, weight, *, demod=True, stride=1, dilation=1,
               compute_dtype=jnp.float32, max_hw_tile=2048, max_ckk_tile=1024,
               weight_resident=None, vmem_budget=40 * 1024 * 1024):
    b, c, h, w = x.shape
    o, c2, k, k2 = weight.shape
    assert c == c2 and k == k2

    # Same-padding rule from the PyTorch module.
    pad = ((h - 1) * (stride - 1) + dilation * (k - 1)) // 2
    h_out = (h + 2 * pad - dilation * (k - 1) - 1) // stride + 1
    w_out = (w + 2 * pad - dilation * (k - 1) - 1) // stride + 1
    HW = h_out * w_out
    CKK = c * k * k

    out_dtype = x.dtype
    comp_itemsize = jnp.dtype(compute_dtype).itemsize
    out_itemsize = jnp.dtype(out_dtype).itemsize

    # Padded sizes: lane dims -> multiples of 128; O -> 8 (f32) / 16 (bf16).
    o_align = 8 if comp_itemsize >= 4 else 16
    O_pad = _round_up(o, o_align)
    CKK_pad = _round_up(CKK, 128)
    HW_pad = _round_up(HW, 128)

    tCKK, tHW, w_resident = _choose_tiling(
        O_pad, CKK_pad, HW_pad, comp_itemsize, comp_itemsize, out_itemsize,
        max_hw_tile=max_hw_tile, max_ckk_tile=max_ckk_tile,
        vmem_budget=vmem_budget, weight_resident=weight_resident)
    n_ckk = CKK_pad // tCKK
    n_hw = HW_pad // tHW

    # ---- glue (plain JAX): im2col in (B, CKK, HW) orientation ---------------
    x_pad = jnp.pad(x, ((0, 0), (0, 0), (pad, pad), (pad, pad)))
    cols = []
    for kh in range(k):
        for kw in range(k):
            hs = kh * dilation
            ws = kw * dilation
            cols.append(
                x_pad[:, :,
                      hs:hs + (h_out - 1) * stride + 1:stride,
                      ws:ws + (w_out - 1) * stride + 1:stride])
    # (B, C, K*K, Ho, Wo) -> (B, C*K*K, Ho*Wo); c-major then (kh, kw).
    patches = jnp.stack(cols, axis=2).reshape(b, CKK, HW)
    patches = jnp.pad(patches, ((0, 0), (0, CKK_pad - CKK), (0, HW_pad - HW)))
    patches = patches.astype(compute_dtype)        # bf16 halves HBM/DMA bytes

    w_flat = weight.reshape(o, CKK).astype(jnp.float32)            # (O, CKK)
    ymod = jnp.repeat(y.astype(jnp.float32) + 1.0, k * k, axis=1)  # (B, CKK)

    # Demodulation factor precomputed exactly in f32 (tiny: B x O).
    if demod:
        d = lax.rsqrt(jnp.einsum('oc,bc->bo', w_flat * w_flat, ymod * ymod,
                                 precision=lax.Precision.HIGHEST) + EPS)
    else:
        d = jnp.ones((b, o), jnp.float32)

    w_store = jnp.pad(w_flat, ((0, O_pad - o), (0, CKK_pad - CKK)))
    w_store = w_store.astype(compute_dtype)                         # (O_pad, CKK_pad)
    ymod = jnp.pad(ymod, ((0, 0), (0, CKK_pad - CKK)))[:, None, :]  # (B,1,CKK_pad)
    d = jnp.pad(d, ((0, 0), (0, O_pad - o)))[:, :, None]            # (B,O_pad,1)

    w_block = (O_pad, CKK_pad) if w_resident else (O_pad, tCKK)
    w_index = (lambda i, j, kk: (0, 0)) if w_resident else (lambda i, j, kk: (0, kk))

    cost = pl.CostEstimate(
        flops=2 * b * O_pad * CKK_pad * HW_pad,
        transcendentals=0,
        bytes_accessed=int(patches.nbytes
                           + (1 if w_resident else b * n_hw) * w_store.nbytes
                           + b * O_pad * HW_pad * out_itemsize))

    out = pl.pallas_call(
        partial(_conv2d_mod_kernel, w_resident=w_resident, tCKK=tCKK),
        out_shape=jax.ShapeDtypeStruct((b, O_pad, HW_pad), out_dtype),
        grid_spec=pltpu.PrefetchScalarGridSpec(
            num_scalar_prefetch=0,
            grid=(b, n_hw, n_ckk),                    # reduction (CKK) axis last
            in_specs=[
                pl.BlockSpec(w_block, w_index),
                pl.BlockSpec((1, 1, tCKK), lambda i, j, kk: (i, 0, kk)),
                pl.BlockSpec((1, O_pad, 1), lambda i, j, kk: (i, 0, 0)),
                pl.BlockSpec((1, tCKK, tHW), lambda i, j, kk: (i, kk, j)),
            ],
            out_specs=pl.BlockSpec((1, O_pad, tHW), lambda i, j, kk: (i, 0, j)),
            scratch_shapes=[pltpu.VMEM((O_pad, tHW), jnp.float32)],
        ),
        compiler_params=pltpu.CompilerParams(
            dimension_semantics=("parallel", "parallel", "arbitrary"),
            vmem_limit_bytes=48 * 1024 * 1024),       # headroom on v7x's 64 MiB
        cost_estimate=cost,
    )(w_store, ymod, d, patches)

    # (B, O_pad, HW_pad) -> (B, O, Ho, Wo): slice padding; reshape is
    # layout-free (NCHW like PyTorch) -- no post-kernel HBM transpose.
    return out[:, :o, :HW].reshape(b, o, h_out, w_out)


def aug_wrapper_forward(images, y, weight, *, prob=0.0, types=(), detach=False,
                        rng=pyrandom, **conv_kwargs):
    """AugWrapper.forward: host-RNG-gated augmentation, then D's hot path."""
    if rng.random() < prob:
        if not (0.5 > rng.random()):          # random_hflip(prob=0.5)
            images = jnp.flip(images, axis=3)
        # TODO(synk): DiffAugment (brightness/saturation/contrast/translation/
        # cutout) is host-RNG-driven python with no clean Pallas equivalent.
    # `detach` only affects autograd; forward value is unchanged.
    return conv2d_mod(images, y, weight, **conv_kwargs)


def _reference(x, y, weight):
    """Pure-JAX Conv2DMod reference (stride=1, dilation=1), f32 exact."""
    o, c, k, _ = weight.shape
    w_mod = weight[None] * (y[:, None, :, None, None] + 1.0)
    d = lax.rsqrt(jnp.sum(w_mod ** 2, axis=(2, 3, 4), keepdims=True) + EPS)
    w_mod = w_mod * d
    pad = (k - 1) // 2
    outs = [lax.conv_general_dilated(
        x[i:i + 1], w_mod[i], window_strides=(1, 1),
        padding=[(pad, pad), (pad, pad)],
        dimension_numbers=('NCHW', 'OIHW', 'NCHW'),
        precision=lax.Precision.HIGHEST) for i in range(x.shape[0])]
    return jnp.concatenate(outs, axis=0)


if __name__ == "__main__":
    key = jax.random.PRNGKey(0)
    k1, k2, k3 = jax.random.split(key, 3)

    B, Cin, Cout, H, W, K = 2, 4, 8, 16, 16, 3

    x = jax.random.normal(k1, (B, Cin, H, W), dtype=jnp.float32)
    y = jax.random.normal(k2, (B, Cin), dtype=jnp.float32)

    # kaiming_normal_(fan_in, leaky_relu a=0): std = sqrt(2 / (Cin*K*K))
    std = math.sqrt(2.0 / (Cin * K * K))
    weight = jax.random.normal(k3, (Cout, Cin, K, K), dtype=jnp.float32) * std

    ref = _reference(x, y, weight)

    # f32 exact path (auto tiling -> weight resident in VMEM).
    out_f32 = jax.block_until_ready(conv2d_mod(x, y, weight))
    assert out_f32.shape == (B, Cout, H, W)
    assert jnp.allclose(out_f32, ref, atol=1e-4, rtol=1e-4), "f32 mismatch vs reference"

    # Streaming (tiled) weight path.
    out_tiled = jax.block_until_ready(
        conv2d_mod(x, y, weight, weight_resident=False))
    assert jnp.allclose(out_tiled, ref, atol=1e-4, rtol=1e-4), "tiled-weight mismatch"

    # Multi-step reduction with resident weight (exercises the in-kernel pl.ds slice).
    Cin2 = 16
    x2 = jax.random.normal(k1, (B, Cin2, H, W), dtype=jnp.float32)
    y2 = jax.random.normal(k2, (B, Cin2), dtype=jnp.float32)
    w2 = jax.random.normal(k3, (Cout, Cin2, K, K), dtype=jnp.float32) \
        * math.sqrt(2.0 / (Cin2 * K * K))
    ref2 = _reference(x2, y2, w2)
    out2 = jax.block_until_ready(
        conv2d_mod(x2, y2, w2, max_ckk_tile=128, weight_resident=True))
    assert jnp.allclose(out2, ref2, atol=1e-4, rtol=1e-4), "resident multi-kk mismatch"

    # bf16 MXU fast path for v6e/v7x (f32 accumulate, bf16 operands + weights).
    out_bf16 = jax.block_until_ready(
        conv2d_mod(x, y, weight, compute_dtype=jnp.bfloat16))
    assert out_bf16.shape == (B, Cout, H, W)
    assert jnp.allclose(out_bf16, ref, atol=1e-1, rtol=1e-1), "bf16 mismatch vs reference"

    # AugWrapper forward with prob=0 (no augmentation) must equal D(x).
    out_aug = jax.block_until_ready(aug_wrapper_forward(x, y, weight, prob=0.0))
    assert jnp.allclose(out_aug, ref, atol=1e-4, rtol=1e-4), "aug wrapper mismatch"

    print("KERNEL_OK")
</pallas_src>

<mosaic_0001>
module attributes {stable_mosaic.version = 11 : i64} {
  func.func @_conv2d_mod_kernel(%arg0: i32, %arg1: i32, %arg2: i32, %arg3: memref<8x128xf32, #tpu.memory_space<vmem>>, %arg4: memref<1x1x128xf32, #tpu.memory_space<vmem>>, %arg5: memref<1x8x1xf32, #tpu.memory_space<vmem>>, %arg6: memref<1x128x256xf32, #tpu.memory_space<vmem>>, %arg7: memref<1x8x256xf32, #tpu.memory_space<vmem>>, %arg8: memref<8x256xf32, #tpu.memory_space<vmem>>) attributes {dimension_semantics = [#tpu.dimension_semantics<parallel>, #tpu.dimension_semantics<parallel>, #tpu.dimension_semantics<arbitrary>], iteration_bounds = array<i64: 2, 1, 1>, scalar_prefetch = 0 : i64, scratch_operands = 1 : i64, tpu.core_type = #tpu.core_type<tc>, window_params = [{pipeline_mode = #tpu.pipeline_mode<synchronous>, transform_indices = @transform_0, window_bounds = array<i64: 8, 128>}, {transform_indices = @transform_1, window_bounds = array<i64: 1, 1, 128>}, {transform_indices = @transform_2, window_bounds = array<i64: 1, 8, 1>}, {transform_indices = @transform_3, window_bounds = array<i64: 1, 128, 256>}, {transform_indices = @transform_4, window_bounds = array<i64: 1, 8, 256>}]} {
    %c0_i32 = arith.constant 0 : i32
    %0 = arith.cmpi eq, %arg2, %c0_i32 : i32
    %1 = arith.extui %0 : i1 to i32
    %c0_i32_0 = arith.constant 0 : i32
    %2 = arith.cmpi ne, %1, %c0_i32_0 : i32
    scf.if %2 {
      %cst_13 = arith.constant 0.000000e+00 : f32
      %20 = vector.broadcast %cst_13 : f32 to vector<8x256xf32>
      %c0_14 = arith.constant 0 : index
      %c0_15 = arith.constant 0 : index
      %21 = vector.load %arg8[%c0_14, %c0_15] : memref<8x256xf32, #tpu.memory_space<vmem>>, vector<8x256xf32>
      tpu.vector_store %arg8[%c0_14, %c0_15], %20 {strides = array<i32>} : memref<8x256xf32, #tpu.memory_space<vmem>>, vector<8x256xf32>,
    } else {
    }
    %c128_i32 = arith.constant 128 : i32
    %3 = arith.muli %arg2, %c128_i32 : i32
    %4 = tpu.assume_multiple %3, 128 : i32
    %c0 = arith.constant 0 : index
    %5 = arith.index_cast %4 : i32 to index
    %6 = vector.load %arg3[%c0, %5] : memref<8x128xf32, #tpu.memory_space<vmem>>, vector<8x128xf32>
    %c0_1 = arith.constant 0 : index
    %c0_2 = arith.constant 0 : index
    %c0_3 = arith.constant 0 : index
    %7 = vector.load %arg4[%c0_1, %c0_2, %c0_3] : memref<1x1x128xf32, #tpu.memory_space<vmem>>, vector<1x1x128xf32>
    %8 = vector.shape_cast %7 : vector<1x1x128xf32> to vector<1x128xf32>
    %9 = vector.broadcast %8 : vector<1x128xf32> to vector<8x128xf32>
    %10 = arith.mulf %6, %9 : vector<8x128xf32>
    %c0_4 = arith.constant 0 : index
    %c0_5 = arith.constant 0 : index
    %11 = vector.load %arg8[%c0_4, %c0_5] : memref<8x256xf32, #tpu.memory_space<vmem>>, vector<8x256xf32>
    %c0_6 = arith.constant 0 : index
    %c0_7 = arith.constant 0 : index
    %c0_8 = arith.constant 0 : index
    %12 = vector.load %arg6[%c0_6, %c0_7, %c0_8] : memref<1x128x256xf32, #tpu.memory_space<vmem>>, vector<1x128x256xf32>
    %13 = vector.shape_cast %12 : vector<1x128x256xf32> to vector<128x256xf32>
    %cst = arith.constant dense<0.000000e+00> : vector<8x256xf32>
    %14 = tpu.matmul %10, %13, %cst {dimension_numbers = #tpu.dot_dimension_numbers<[1], [0], [0], [1], [0, 0, 1, 1], [], []>} : vector<8x128xf32>, vector<128x256xf32>, vector<8x256xf32> -> vector<8x256xf32>
    %15 = arith.addf %11, %14 : vector<8x256xf32>
    %c0_9 = arith.constant 0 : index
    %c0_10 = arith.constant 0 : index
    %16 = vector.load %arg8[%c0_9, %c0_10] : memref<8x256xf32, #tpu.memory_space<vmem>>, vector<8x256xf32>
    tpu.vector_store %arg8[%c0_9, %c0_10], %15 {strides = array<i32>} : memref<8x256xf32, #tpu.memory_space<vmem>>, vector<8x256xf32>,
    %c0_i32_11 = arith.constant 0 : i32
    %17 = arith.cmpi eq, %arg2, %c0_i32_11 : i32
    %18 = arith.extui %17 : i1 to i32
    %c0_i32_12 = arith.constant 0 : i32
    %19 = arith.cmpi ne, %18, %c0_i32_12 : i32
    scf.if %19 {
      %c0_13 = arith.constant 0 : index
      %c0_14 = arith.constant 0 : index
      %20 = vector.load %arg8[%c0_13, %c0_14] : memref<8x256xf32, #tpu.memory_space<vmem>>, vector<8x256xf32>
      %c0_15 = arith.constant 0 : index
      %c0_16 = arith.constant 0 : index
      %c0_17 = arith.constant 0 : index
      %21 = vector.load %arg5[%c0_15, %c0_16, %c0_17] : memref<1x8x1xf32, #tpu.memory_space<vmem>>, vector<1x8x1xf32>
      %22 = vector.shape_cast %21 : vector<1x8x1xf32> to vector<8x1xf32>
      %23 = vector.broadcast %22 : vector<8x1xf32> to vector<8x256xf32>
      %24 = arith.mulf %20, %23 : vector<8x256xf32>
      %c0_18 = arith.constant 0 : index
      %c0_19 = arith.constant 0 : index
      %c0_20 = arith.constant 0 : index
      %25 = vector.load %arg7[%c0_18, %c0_19, %c0_20] : memref<1x8x256xf32, #tpu.memory_space<vmem>>, vector<1x8x256xf32>
      %26 = vector.shape_cast %25 : vector<1x8x256xf32> to vector<8x256xf32>
      %27 = vector.shape_cast %24 : vector<8x256xf32> to vector<1x8x256xf32>
      tpu.vector_store %arg7[%c0_18, %c0_19, %c0_20], %27 {strides = array<i32>} : memref<1x8x256xf32, #tpu.memory_space<vmem>>, vector<1x8x256xf32>,
    } else {
    }
    return
  }
  func.func @transform_0(%arg0: i32, %arg1: i32, %arg2: i32) -> (i32, i32) {
    %c0_i32 = arith.constant 0 : i32
    %c0_i32_0 = arith.constant 0 : i32
    %c0_i32_1 = arith.constant 0 : i32
    return %c0_i32, %c0_i32_0 : i32, i32
  }
  func.func @transform_1(%arg0: i32, %arg1: i32, %arg2: i32) -> (i32, i32, i32) {
    %c0_i32 = arith.constant 0 : i32
    %c0_i32_0 = arith.constant 0 : i32
    return %arg0, %c0_i32, %arg2 : i32, i32, i32
  }
  func.func @transform_2(%arg0: i32, %arg1: i32, %arg2: i32) -> (i32, i32, i32) {
    %c0_i32 = arith.constant 0 : i32
    %c0_i32_0 = arith.constant 0 : i32
    %c0_i32_1 = arith.constant 0 : i32
    return %arg0, %c0_i32, %c0_i32_0 : i32, i32, i32
  }
  func.func @transform_3(%arg0: i32, %arg1: i32, %arg2: i32) -> (i32, i32, i32) {
    %c0_i32 = arith.constant 0 : i32
    return %arg0, %arg2, %arg1 : i32, i32, i32
  }
  func.func @transform_4(%arg0: i32, %arg1: i32, %arg2: i32) -> (i32, i32, i32) {
    %c0_i32 = arith.constant 0 : i32
    %c0_i32_0 = arith.constant 0 : i32
    return %arg0, %c0_i32, %arg1 : i32, i32, i32
  }
}

</mosaic_0001>

<llo_original>
// kernel: tpu_custom_call.1
$region0: #{tpu_custom_call.1}
  #allocation0 [shape = 'u32[]', space=smem, size = 0x4, offset = 0x4, fixed_abs, tag = 'smem constant byte address 0x4 - core index']
  #allocation1 [shape = 'u32[144,128]{1,0:T(1,128)}', space=vmem, size = 0x12000, scoped, tag = 'internal scratch']
  #allocation2 [shape = 'f32[8,256]{1,0:T(8,128)}', space=vmem, size = 0x2000, scoped, tag = 'scratch operand']
  %s0 = inlined_call_operand.vmem [shape: f32[8,128], index: 0, kind: input, shape index: {}]
  %s1 = inlined_call_operand.vmem [shape: f32[2,1,128], index: 1, kind: input, shape index: {}]
  %s2 = inlined_call_operand.vmem [shape: f32[2,8,1], index: 2, kind: input, shape index: {}]
  %s3 = inlined_call_operand.hbm [shape: f32[2,128,256], index: 3, kind: input, shape index: {}]
  %s4 = inlined_call_operand.hbm [shape: f32[2,8,256], index: 4, kind: output, shape index: {}]
  %s5 = sld [smem:[#allocation0]]
  $region61: #{tpu_custom_call.1} parent=0
    _
  %s7 = ssub.s32 1, %s5
  %s8 = scalar_select 0, %s7, %s5
  $region1: #{tpu_custom_call.1} parent=0
    #allocation3 [shape = 'u8[262144]{0}', space=vmem, size = 0x40000, scoped, tag = 'input window, operand 3']
    #allocation4 [shape = 's32[2]{0}', space=sflag, size = 0x8, scoped, tag = 'scoped memory for tpu_custom_call.1']
    #allocation5 [shape = 's32[2]{0}', space=sflag, size = 0x8, scoped, tag = 'scoped memory for tpu_custom_call.1']
    #allocation6 [shape = 'u8[16384]{0}', space=vmem, size = 0x4000, scoped, tag = 'output window, operand 0']
    %9 = vsyncpa [#allocation4], 0
    %s10 = scalar_lea.sflag [#allocation4], 1
    %11 = vsyncpa %s10, 0
    %12 = vsyncpa [#allocation5], 0
    %s13 = scalar_lea.sflag [#allocation5], 1
    %14 = vsyncpa %s13, 0
    loop: start=0, step=1, limit=4
    $region2: #{tpu_custom_call.1} parent=1 // loop_pre_header
      _
    $region3: #{tpu_custom_call.1} parent=1 // loop_header
      %s16 = sphi 0, %s20
      %p17 = scmp.ge.s32.totalorder %s16, 4
      %s23 = sphi 0, %s42
      %s24 = sphi 0, %s38
      %s25 = sphi 0, %s34
      %s26 = sphi 0, %s23
      %s27 = sphi 0, %s24
      %s28 = sphi 0, %s25
      %s29 = sphi 0, %s26
      %s30 = sphi 0, %s27
      %s31 = sphi 0, %s28
      %s43 = sphi 0, %s43
      %s45 = sphi 0, %s43
      %s46 = sphi 0, %s45
      %s60 = sphi 0, %s46
      %s68 = sphi 0, %s70
      %s71 = sphi 0, %s68
      %s72 = sphi 0, %s71
      %s88 = sphi 0, %s72
      %s94 = sphi 0, %s96
      %s97 = sphi 0, %s94
      %s98 = sphi 0, %s97
      %s114 = sphi 0, %s98
      %s124 = sphi 0, %s126
      %s127 = sphi 0, %s124
      %s128 = sphi 0, %s127
      %s144 = sphi 0, %s128
      %s152 = sphi 0, %s154
      %s155 = sphi 0, %s152
      %s156 = sphi 0, %s155
      %s172 = sphi 0, %s156
    $region4: #{tpu_custom_call.1} parent=1 // loop_header_branch
      %19 = sbr.rel (%p17) target = $region8
    $region5: #{tpu_custom_call.1} parent=1 // loop_body
      %s21 = ssub.s32 %s16, 1
      %s22 = ssub.s32 %s16, 2
      %s32 = sadd.s32 1, %s25
      %p33 = scmp.ge.s32.totalorder %s32, 1
      %s34 = scalar_select %p33, 0, %s32
      %s35 = sadd.s32 1, %s24
      %s36 = scalar_select %p33, %s35, %s24
      %p37 = scmp.ge.s32.totalorder %s36, 1
      %s38 = scalar_select %p37, 0, %s36
      %s39 = sadd.s32 1, %s23
      %s40 = scalar_select %p37, %s39, %s23
      %p41 = scmp.ge.s32.totalorder %s40, 2
      %s42 = scalar_select %p41, 0, %s40
      %s44 = sadd.s32 %s43, 1
      %p47 = scmp.eq.s32.totalorder %s16, 1
      %p48 = scmp.ne.s32.totalorder %s43, %s45
      %p49 = scmp.eq.s32.totalorder %s16, 0
      %p50 = por %p48, %p49
      %p51 = scmp.ne.s32.totalorder %s43, %s45
      %p52 = scmp.eq.s32.totalorder %s21, 1
      %p53 = por %p51, %p52
      %p54 = scmp.ne.s32.totalorder %s45, %s46
      %p55 = scmp.eq.s32.totalorder %s21, 0
      %p56 = por %p54, %p55
      %p57 = scmp.ne.s32.totalorder %s45, %s46
      %p58 = scmp.eq.s32.totalorder %s22, 1
      %p59 = por %p57, %p58
      %p61 = scmp.ne.s32.totalorder %s46, %s60
      %p62 = scmp.eq.s32.totalorder %s22, 0
      %p63 = por %p61, %p62
      %s64 = ssub.s32 %s23, %s42
      %s65 = ssub.s32 %s25, %s34
      %s66 = sor.u32 %s64, %s65
      %p67 = scmp.eq.s32.totalorder %s66, 0
      %s69 = sadd.s32 %s68, 1
      %s70 = scalar_select %p67, %s68, %s69
      %p73 = pneg %p67
      %p74 = scmp.eq.s32.totalorder %s16, 1
      %p75 = por %p73, %p74
      %p76 = scmp.ne.s32.totalorder %s68, %s71
      %p77 = scmp.eq.s32.totalorder %s16, 0
      %p78 = por %p76, %p77
      %p79 = scmp.ne.s32.totalorder %s68, %s71
      %p80 = scmp.eq.s32.totalorder %s21, 1
      %p81 = por %p79, %p80
      %p82 = scmp.ne.s32.totalorder %s71, %s72
      %p83 = scmp.eq.s32.totalorder %s21, 0
      %p84 = por %p82, %p83
      %p85 = scmp.ne.s32.totalorder %s71, %s72
      %p86 = scmp.eq.s32.totalorder %s22, 1
      %p87 = por %p85, %p86
      %p89 = scmp.ne.s32.totalorder %s72, %s88
      %p90 = scmp.eq.s32.totalorder %s22, 0
      %p91 = por %p89, %p90
      %s92 = ssub.s32 %s23, %s42
      %p93 = scmp.eq.s32.totalorder %s92, 0
      %s95 = sadd.s32 %s94, 1
      %s96 = scalar_select %p93, %s94, %s95
      %p99 = pneg %p93
      %p100 = scmp.eq.s32.totalorder %s16, 1
      %p101 = por %p99, %p100
      %p102 = scmp.ne.s32.totalorder %s94, %s97
      %p103 = scmp.eq.s32.totalorder %s16, 0
      %p104 = por %p102, %p103
      %p105 = scmp.ne.s32.totalorder %s94, %s97
      %p106 = scmp.eq.s32.totalorder %s21, 1
      %p107 = por %p105, %p106
      %p108 = scmp.ne.s32.totalorder %s97, %s98
      %p109 = scmp.eq.s32.totalorder %s21, 0
      %p110 = por %p108, %p109
      %p111 = scmp.ne.s32.totalorder %s97, %s98
      %p112 = scmp.eq.s32.totalorder %s22, 1
      %p113 = por %p111, %p112
      %p115 = scmp.ne.s32.totalorder %s98, %s114
      %p116 = scmp.eq.s32.totalorder %s22, 0
      %p117 = por %p115, %p116
      %s118 = ssub.s32 %s23, %s42
      %s119 = ssub.s32 %s25, %s34
      %s120 = sor.u32 %s118, %s119
      %s121 = ssub.s32 %s24, %s38
      %s122 = sor.u32 %s120, %s121
      %p123 = scmp.eq.s32.totalorder %s122, 0
      %s125 = sadd.s32 %s124, 1
      %s126 = scalar_select %p123, %s124, %s125
      %p129 = pneg %p123
      %p130 = scmp.eq.s32.totalorder %s16, 1
      %p131 = por %p129, %p130
      %p132 = scmp.ne.s32.totalorder %s124, %s127
      %p133 = scmp.eq.s32.totalorder %s16, 0
      %p134 = por %p132, %p133
      %p135 = scmp.ne.s32.totalorder %s124, %s127
      %p136 = scmp.eq.s32.totalorder %s21, 1
      %p137 = por %p135, %p136
      %p138 = scmp.ne.s32.totalorder %s127, %s128
      %p139 = scmp.eq.s32.totalorder %s21, 0
      %p140 = por %p138, %p139
      %p141 = scmp.ne.s32.totalorder %s127, %s128
      %p142 = scmp.eq.s32.totalorder %s22, 1
      %p143 = por %p141, %p142
      %p145 = scmp.ne.s32.totalorder %s128, %s144
      %p146 = scmp.eq.s32.totalorder %s22, 0
      %p147 = por %p145, %p146
      %s148 = ssub.s32 %s23, %s42
      %s149 = ssub.s32 %s24, %s38
      %s150 = sor.u32 %s148, %s149
      %p151 = scmp.eq.s32.totalorder %s150, 0
      %s153 = sadd.s32 %s152, 1
      %s154 = scalar_select %p151, %s152, %s153
      %p157 = pneg %p151
      %p158 = scmp.eq.s32.totalorder %s16, 1
      %p159 = por %p157, %p158
      %p160 = scmp.ne.s32.totalorder %s152, %s155
      %p161 = scmp.eq.s32.totalorder %s16, 0
      %p162 = por %p160, %p161
      %p163 = scmp.ne.s32.totalorder %s152, %s155
      %p164 = scmp.eq.s32.totalorder %s21, 1
      %p165 = por %p163, %p164
      %p166 = scmp.ne.s32.totalorder %s155, %s156
      %p167 = scmp.eq.s32.totalorder %s21, 0
      %p168 = por %p166, %p167
      %p169 = scmp.ne.s32.totalorder %s155, %s156
      %p170 = scmp.eq.s32.totalorder %s22, 1
      %p171 = por %p169, %p170
      %p173 = scmp.ne.s32.totalorder %s156, %s172
      %p174 = scmp.eq.s32.totalorder %s22, 0
      %p175 = por %p173, %p174
      %p176 = scmp.le.s32.totalorder 1, %s16
      %p177 = scmp.lt.s32.totalorder %s16, 3
      %p178 = pnand %p176, %p177
      %p179 = pneg %p178
      // Predicated region
      $region9: #{tpu_custom_call.1} parent=5 // pred_check
        _
      $region10: #{tpu_custom_call.1} parent=5 // pred_check_branch
        %181 = sbr.rel (%p178) target = $region12
      $region11: #{tpu_custom_call.1} parent=5 // pred_region
        %s182 = ssub.s32 %s16, 1
        // Predicated region
        $region13: #{tpu_custom_call.1} parent=11 // pred_check
          %p183 = pneg %p56
        $region14: #{tpu_custom_call.1} parent=11 // pred_check_branch
          %185 = sbr.rel (%p183) target = $region16
        $region15: #{tpu_custom_call.1} parent=11 // pred_region
          _
        $region16: #{tpu_custom_call.1} parent=11 // pred_fallthru
          _
      $region12: #{tpu_custom_call.1} parent=5 // pred_fallthru
        _
      %p186 = scmp.lt.s32.totalorder %s16, 2
      // Predicated region
      $region17: #{tpu_custom_call.1} parent=5 // pred_check
        %p187 = pneg %p186
      $region18: #{tpu_custom_call.1} parent=5 // pred_check_branch
        %189 = sbr.rel (%p187) target = $region20
      $region19: #{tpu_custom_call.1} parent=5 // pred_region
        // Predicated region
        $region21: #{tpu_custom_call.1} parent=19 // pred_check
          %p190 = pneg %p78
        $region22: #{tpu_custom_call.1} parent=19 // pred_check_branch
          %192 = sbr.rel (%p190) target = $region24
        $region23: #{tpu_custom_call.1} parent=19 // pred_region
          %p193 = scmp.lt.s32.totalorder %s23, 1
          %s194 = scalar_select %p193, %s23, 1
          %p195 = scmp.lt.s32.totalorder %s25, 0
          %s196 = scalar_select %p195, %s25, 0
          %s197 = sadd.s32 %s196, %s194
          %s198 = scalar_lea.vmem %s1, %s197
        $region24: #{tpu_custom_call.1} parent=19 // pred_fallthru
          _
        // Predicated region
        $region25: #{tpu_custom_call.1} parent=19 // pred_check
          %p199 = pneg %p104
        $region26: #{tpu_custom_call.1} parent=19 // pred_check_branch
          %201 = sbr.rel (%p199) target = $region28
        $region27: #{tpu_custom_call.1} parent=19 // pred_region
          %p202 = scmp.lt.s32.totalorder %s23, 1
          %s203 = scalar_select %p202, %s23, 1
          %s204 = smul.addr %s203, 8
          %s205 = scalar_lea.vmem %s2, %s204
        $region28: #{tpu_custom_call.1} parent=19 // pred_fallthru
          _
        // Predicated region
        $region29: #{tpu_custom_call.1} parent=19 // pred_check
          %p206 = pneg %p134
        $region30: #{tpu_custom_call.1} parent=19 // pred_check_branch
          %208 = sbr.rel (%p206) target = $region32
        $region31: #{tpu_custom_call.1} parent=19 // pred_region
          %s209 = sand.u32 %s124, 1
          %s210 = scalar_lea.sflag [#allocation4], %s209
          %s211 = sand.u32 %s124, 1
          %s212 = smul.addr %s211, 256
          %s213 = scalar_lea.vmem [#allocation3], %s212
          %s214 = smul.u32 16, %s25
          %s215 = smul.u32 2, %s24
          %s217 = ssub.s32 4096, 4096
          %218 = vsyncadd %s210, %s217
          %s219 = smul.addr %s214, 2
          %s220 = sadd.s32 %s215, %s219
          %s221 = smul.addr %s23, 32
          %s222 = sadd.s32 %s220, %s221
          %s223 = smul.addr %s222, 128
          %s224 = scalar_lea.hbm %s3, %s223
          %s225 = sshll.u32 %s213, 4
          %s226 = int_to_ptr.vmem [resolvable:$true] %s225
          %231 = dma.hbm_to_vmem [thread:$0]  %s224, 4096, %s226, %s210, 256, 256, 16
        $region32: #{tpu_custom_call.1} parent=19 // pred_fallthru
          _
      $region20: #{tpu_custom_call.1} parent=5 // pred_fallthru
        _
      %p232 = scmp.le.s32.totalorder 1, %s16
      %p233 = scmp.lt.s32.totalorder %s16, 3
      %p234 = pnand %p232, %p233
      %p235 = pneg %p234
      // Predicated region
      $region33: #{tpu_custom_call.1} parent=5 // pred_check
        _
      $region34: #{tpu_custom_call.1} parent=5 // pred_check_branch
        %237 = sbr.rel (%p234) target = $region36
      $region35: #{tpu_custom_call.1} parent=5 // pred_region
        %s238 = ssub.s32 %s16, 1
        %s239 = sand.u32 %s127, 1
        %s240 = scalar_lea.sflag [#allocation4], %s239
        %s241 = sand.u32 %s127, 1
        %s242 = smul.addr %s241, 256
        %s243 = scalar_lea.vmem [#allocation3], %s242
        // Predicated region
        $region37: #{tpu_custom_call.1} parent=35 // pred_check
          %p244 = pneg %p140
        $region38: #{tpu_custom_call.1} parent=35 // pred_check_branch
          %246 = sbr.rel (%p244) target = $region40
        $region39: #{tpu_custom_call.1} parent=35 // pred_region
          %247 = dma.done %s240, 4096
        $region40: #{tpu_custom_call.1} parent=35 // pred_fallthru
          _
        %p248 = pneg %p56
        %p249 = pneg %p53
        %p250 = scmp.lt.s32.totalorder %s26, 1
        %s251 = scalar_select %p250, %s26, 1
        %p252 = scmp.lt.s32.totalorder %s28, 0
        %s253 = scalar_select %p252, %s28, 0
        %s254 = sadd.s32 %s253, %s251
        %s255 = scalar_lea.vmem %s1, %s254
        %p256 = pneg %p84
        %p257 = pneg %p81
        %p258 = scmp.lt.s32.totalorder %s26, 1
        %s259 = scalar_select %p258, %s26, 1
        %s260 = smul.addr %s259, 8
        %s261 = scalar_lea.vmem %s2, %s260
        %p262 = pneg %p110
        %p263 = pneg %p107
        %s264 = sand.u32 %s127, 1
        %s265 = scalar_lea.sflag [#allocation4], %s264
        %s266 = sand.u32 %s127, 1
        %s267 = smul.addr %s266, 256
        %s268 = scalar_lea.vmem [#allocation3], %s267
        %p269 = pneg %p140
        %p270 = pneg %p137
        %p271 = pneg %p168
        %p272 = pneg %p165
        %s273 = sand.u32 %s155, 1
        %s274 = scalar_lea.sflag [#allocation5], %s273
        %s275 = sand.u32 %s155, 1
        %s276 = smul.addr %s275, 16
        %s277 = scalar_lea.vmem [#allocation6], %s276
        %p278 = scmp.lt.s32.totalorder %s26, 1
        %s279 = scalar_select %p278, %s26, 1
        %p280 = scmp.lt.s32.totalorder %s28, 0
        %s281 = scalar_select %p280, %s28, 0
        %s282 = sadd.s32 %s281, %s279
        %s283 = scalar_lea.vmem %s1, %s282
        %p284 = scmp.lt.s32.totalorder %s26, 1
        %s285 = scalar_select %p284, %s26, 1
        %s286 = smul.addr %s285, 8
        %s287 = scalar_lea.vmem %s2, %s286
        %s288 = smul.u32 16, %s28
        %s289 = smul.u32 2, %s27
        %s290 = smul.u32 2, %s27
        %p291 = scmp.eq.s32.totalorder %s28, 0
        // Predicated region
        $region41: #{tpu_custom_call.1} parent=35 // pred_check
          %p292 = pneg %p291
        $region42: #{tpu_custom_call.1} parent=35 // pred_check_branch
          %294 = sbr.rel (%p292) target = $region44
        $region43: #{tpu_custom_call.1} parent=35 // pred_region
          %295 = vst [vmem:[#allocation2] sm:$0xff] 0.0
          %296 = vst [vmem:[#allocation2 + $0x8] sm:$0xff] 0.0
        $region44: #{tpu_custom_call.1} parent=35 // pred_fallthru
          _
        %s297 = smul.u32 %s28, 128
        %s298 = sshra.s32 %s297, 7
        %s299 = sand.u32 %s297, 127
        %s300 = scalar_lea.vmem %s0, %s298
        %v301 = vld [vmem:[%s300] sm:$0xff]
        %v302 = vld [vmem:[%s283] sm:$0x1]
        %v304 = vlaneseq
        %v305 = vshrl.u32 %v304, 7
        %v306 = vsub.s32 0, %v305
        %v307 = vrot.slane %v302, %v306
        %v309 = vmul.f32 %v301, %v307
        %v310 = vld [vmem:[#allocation2] sm:$0xff]
        %v311 = vld [vmem:[#allocation2 + $0x8] sm:$0xff]
        %v312 = vld [vmem:[%s243] sm:$0xff]
        %v313 = vld [vmem:[%s243 + $0x8] sm:$0xff]
        %v314 = vld [vmem:[%s243 + $0x10] sm:$0xff]
        %v315 = vld [vmem:[%s243 + $0x18] sm:$0xff]
        %v316 = vld [vmem:[%s243 + $0x20] sm:$0xff]
        %v317 = vld [vmem:[%s243 + $0x28] sm:$0xff]
        %v318 = vld [vmem:[%s243 + $0x30] sm:$0xff]
        %v319 = vld [vmem:[%s243 + $0x38] sm:$0xff]
        %v320 = vld [vmem:[%s243 + $0x40] sm:$0xff]
        %v321 = vld [vmem:[%s243 + $0x48] sm:$0xff]
        %v322 = vld [vmem:[%s243 + $0x50] sm:$0xff]
        %v323 = vld [vmem:[%s243 + $0x58] sm:$0xff]
        %v324 = vld [vmem:[%s243 + $0x60] sm:$0xff]
        %v325 = vld [vmem:[%s243 + $0x68] sm:$0xff]
        %v326 = vld [vmem:[%s243 + $0x70] sm:$0xff]
        %v327 = vld [vmem:[%s243 + $0x78] sm:$0xff]
        %v328 = vld [vmem:[%s243 + $0x80] sm:$0xff]
        %v329 = vld [vmem:[%s243 + $0x88] sm:$0xff]
        %v330 = vld [vmem:[%s243 + $0x90] sm:$0xff]
        %v331 = vld [vmem:[%s243 + $0x98] sm:$0xff]
        %v332 = vld [vmem:[%s243 + $0xa0] sm:$0xff]
        %v333 = vld [vmem:[%s243 + $0xa8] sm:$0xff]
        %v334 = vld [vmem:[%s243 + $0xb0] sm:$0xff]
        %v335 = vld [vmem:[%s243 + $0xb8] sm:$0xff]
        %v336 = vld [vmem:[%s243 + $0xc0] sm:$0xff]
        %v337 = vld [vmem:[%s243 + $0xc8] sm:$0xff]
        %v338 = vld [vmem:[%s243 + $0xd0] sm:$0xff]
        %v339 = vld [vmem:[%s243 + $0xd8] sm:$0xff]
        %v340 = vld [vmem:[%s243 + $0xe0] sm:$0xff]
        %v341 = vld [vmem:[%s243 + $0xe8] sm:$0xff]
        %v342 = vld [vmem:[%s243 + $0xf0] sm:$0xff]
        %v343 = vld [vmem:[%s243 + $0xf8] sm:$0xff]
        %344 = vmatprep.subr.mxu0 %v313
        %345 = vmatpush1.msra.mxu0 %v312
        %346 = vmatprep.subr.mxu0 %v315
        %347 = vmatpush1.msra.mxu0 %v314
        %348 = vmatprep.subr.mxu0 %v317
        %349 = vmatpush1.msra.mxu0 %v316
        %350 = vmatprep.subr.mxu0 %v319
        %351 = vmatpush1.msra.mxu0 %v318
        %352 = vmatprep.subr.mxu0 %v321
        %353 = vmatpush1.msra.mxu0 %v320
        %354 = vmatprep.subr.mxu0 %v323
        %355 = vmatpush1.msra.mxu0 %v322
        %356 = vmatprep.subr.mxu0 %v325
        %357 = vmatpush1.msra.mxu0 %v324
        %358 = vmatprep.subr.mxu0 %v327
        %359 = vmatpush1.msra.mxu0 %v326
        %360 = vmatprep.subr.mxu0 %v329
        %361 = vmatpush1.msra.mxu0 %v328
        %362 = vmatprep.subr.mxu0 %v331
        %363 = vmatpush1.msra.mxu0 %v330
        %364 = vmatprep.subr.mxu0 %v333
        %365 = vmatpush1.msra.mxu0 %v332
        %366 = vmatprep.subr.mxu0 %v335
        %367 = vmatpush1.msra.mxu0 %v334
        %368 = vmatprep.subr.mxu0 %v337
        %369 = vmatpush1.msra.mxu0 %v336
        %370 = vmatprep.subr.mxu0 %v339
        %371 = vmatpush1.msra.mxu0 %v338
        %372 = vmatprep.subr.mxu0 %v341
        %373 = vmatpush1.msra.mxu0 %v340
        %374 = vmatprep.subr.mxu0 %v343
        %375 = vmatpush1.msra.mxu0 %v342
        %376 = vmatprep.subr.mxu0 0.0
        %377 = vmatpush1.msra.mxu0 0.0
        %378 = vmatprep.subr.mxu0 0.0
        %379 = vmatpush1.msra.mxu0 0.0
        %380 = vmatprep.subr.mxu0 0.0
        %381 = vmatpush1.msra.mxu0 0.0
        %382 = vmatprep.subr.mxu0 0.0
        %383 = vmatpush1.msra.mxu0 0.0
        %384 = vmatprep.subr.mxu0 0.0
        %385 = vmatpush1.msra.mxu0 0.0
        %386 = vmatprep.subr.mxu0 0.0
        %387 = vmatpush1.msra.mxu0 0.0
        %388 = vmatprep.subr.mxu0 0.0
        %389 = vmatpush1.msra.mxu0 0.0
        %390 = vmatprep.subr.mxu0 0.0
        %391 = vmatpush1.msra.mxu0 0.0
        %392 = vmatprep.subr.mxu0 0.0
        %393 = vmatpush1.msra.mxu0 0.0
        %394 = vmatprep.subr.mxu0 0.0
        %395 = vmatpush1.msra.mxu0 0.0
        %396 = vmatprep.subr.mxu0 0.0
        %397 = vmatpush1.msra.mxu0 0.0
        %398 = vmatprep.subr.mxu0 0.0
        %399 = vmatpush1.msra.mxu0 0.0
        %400 = vmatprep.subr.mxu0 0.0
        %401 = vmatpush1.msra.mxu0 0.0
        %402 = vmatprep.subr.mxu0 0.0
        %403 = vmatpush1.msra.mxu0 0.0
        %404 = vmatprep.subr.mxu0 0.0
        %405 = vmatpush1.msra.mxu0 0.0
        %406 = vmatprep.subr.mxu0 0.0
        %407 = vmatpush1.msra.mxu0 0.0
        %408 = vmatprep.mubr.f32.mxu0 0.0
        %409 = vmatmul.mubr.f32.gmra.mrb[0].mxu0 %v309
        %v410 = vpop.f32.mrb[0].mxu0
        %v411 = vadd.f32 0.0, %v410
        %v412 = vpop.f32.mrb[0].mxu0
        %v413 = vadd.f32 0.0, %v412
        %414 = vdwg.mxu0
        %v415 = vadd.f32 %v310, %v411
        %v416 = vadd.f32 %v311, %v413
        %417 = vst [vmem:[#allocation2] sm:$0xff] %v415
        %418 = vst [vmem:[#allocation2 + $0x8] sm:$0xff] %v416
        // Predicated region
        $region45: #{tpu_custom_call.1} parent=35 // pred_check
          %p419 = pneg %p291
        $region46: #{tpu_custom_call.1} parent=35 // pred_check_branch
          %421 = sbr.rel (%p419) target = $region48
        $region47: #{tpu_custom_call.1} parent=35 // pred_region
          %v422 = vld [vmem:[#allocation2] sm:$0xff]
          %v423 = vld [vmem:[#allocation2 + $0x8] sm:$0xff]
          %v424 = vld [vmem:[%s287] sm:$0xff]
          %426 = vset.pattern.permute.xlu0 0
          %427 = vperm.xlu0 %426, %v424
          %v428 = vpop.permute.xlu0 %427
          %v430 = vmul.f32 %v422, %v428
          %v431 = vmul.f32 %v423, %v428
          %432 = vst [vmem:[%s277] sm:$0xff] %v430
          %433 = vst [vmem:[%s277 + $0x8] sm:$0xff] %v431
        $region48: #{tpu_custom_call.1} parent=35 // pred_fallthru
          _
        %s434 = sand.u32 %s155, 1
        %s435 = scalar_lea.sflag [#allocation5], %s434
        %s436 = sand.u32 %s155, 1
        %s437 = smul.addr %s436, 16
        %s438 = scalar_lea.vmem [#allocation6], %s437
        // Predicated region
        $region49: #{tpu_custom_call.1} parent=35 // pred_check
          %p439 = pneg %p165
        $region50: #{tpu_custom_call.1} parent=35 // pred_check_branch
          %441 = sbr.rel (%p439) target = $region52
        $region51: #{tpu_custom_call.1} parent=35 // pred_region
          %s442 = smul.u32 2, %s27
          %s444 = ssub.s32 256, 256
          %445 = vsyncadd %s435, %s444
          %s446 = smul.addr %s26, 2
          %s447 = sadd.s32 %s442, %s446
          %s448 = smul.addr %s447, 128
          %s449 = scalar_lea.hbm %s4, %s448
          %s451 = sshll.u32 %s438, 4
          %s452 = int_to_ptr.vmem [resolvable:$true] %s451
          %454 = dma.vmem_to_hbm [thread:$0]  %s452, 256, %s449, %s435
        $region52: #{tpu_custom_call.1} parent=35 // pred_fallthru
          _
      $region36: #{tpu_custom_call.1} parent=5 // pred_fallthru
        _
      %p455 = scmp.le.s32.totalorder 2, %s16
      // Predicated region
      $region53: #{tpu_custom_call.1} parent=5 // pred_check
        %p456 = pneg %p455
      $region54: #{tpu_custom_call.1} parent=5 // pred_check_branch
        %458 = sbr.rel (%p456) target = $region56
      $region55: #{tpu_custom_call.1} parent=5 // pred_region
        %s459 = ssub.s32 %s16, 2
        // Predicated region
        $region57: #{tpu_custom_call.1} parent=55 // pred_check
          %p460 = pneg %p171
        $region58: #{tpu_custom_call.1} parent=55 // pred_check_branch
          %462 = sbr.rel (%p460) target = $region60
        $region59: #{tpu_custom_call.1} parent=55 // pred_region
          %s463 = sand.u32 %s156, 1
          %s464 = scalar_lea.sflag [#allocation5], %s463
          %s465 = sand.u32 %s156, 1
          %s466 = smul.addr %s465, 16
          %s467 = scalar_lea.vmem [#allocation6], %s466
          %468 = dma.done %s464, 256
        $region60: #{tpu_custom_call.1} parent=55 // pred_fallthru
          _
      $region56: #{tpu_custom_call.1} parent=5 // pred_fallthru
        _
    $region6: #{tpu_custom_call.1} parent=1 // loop_footer
      %s20 = sadd.s32 1, %s16
    $region7: #{tpu_custom_call.1} parent=1 // loop_footer_branch
      %15 = sbr.rel target = $region3
    $region8: #{tpu_custom_call.1} parent=1 // loop_exit
      _
    %469 = vsyncpa [#allocation4], 1
    %s470 = scalar_lea.sflag [#allocation4], 1
    %471 = vsyncpa %s470, 1
    %472 = vsyncpa [#allocation5], 1
    %s473 = scalar_lea.sflag [#allocation5], 1
    %474 = vsyncpa %s473, 1

</llo_original>
